<compile_context>
chip_gen: v7x
topology: tpu7x:2x2x1
jax: 0.10.0
libtpu: 0.0.40
codegen_flags: <defaults>
</compile_context>

<pallas_src>
import math
import functools

import jax
import jax.numpy as jnp
from jax.experimental import pallas as pl
from jax.experimental.pallas import tpu as pltpu


def _round_up(x: int, m: int) -> int:
    return (x + m - 1) // m * m


def _choose_tile_n(n: int, charset_p: int) -> int:
    """Largest multiple-of-8 tile <= 256 that divides n (0 if none exists).

    Keeps >= 2 grid blocks when n >= 16 (v7x megacore) and bounds the materialized
    (tile_n, charset_p) one-hot intermediate to ~256 KiB.
    """
    cap = 256
    if n >= 16:
        cap = min(cap, _round_up((n + 1) // 2, 8))          # leave >= 2 blocks
    cap = min(cap, max(8, ((256 * 1024) // (4 * charset_p)) // 8 * 8))
    cap = max(8, cap - cap % 8)
    t = cap
    while t >= 8:
        if n % t == 0:
            return t
        t -= 8
    return 0


def _token_embedding_kernel(tok_ref, emb_ref, out_ref, *, scale, tile_n, charset_p):
    # tok_ref: (N_p, 1) int32 — full token column, VMEM-resident (constant index_map)
    # emb_ref: (charset_p, embed_dim_p) f32 — full table, VMEM-resident
    # out_ref: (tile_n, embed_dim_p) — this block's output rows
    start = pl.multiple_of(pl.program_id(0) * tile_n, tile_n)
    tok = tok_ref[pl.ds(start, tile_n), :]                       # (tile_n, 1) int32

    # {0,1} one-hot over a 128-multiple charset; OOB / padding ids -> zero rows.
    col = jax.lax.broadcasted_iota(jnp.int32, (tile_n, charset_p), 1)
    onehot = (col == tok).astype(jnp.float32)

    # Row select on the MXU; scale applied post-matmul on the VPU in f32 (exact).
    rows = jnp.dot(onehot, emb_ref[...], preferred_element_type=jnp.float32)
    out_ref[...] = (rows * jnp.float32(scale)).astype(out_ref.dtype)


def token_embedding(tokens: jax.Array, embedding: jax.Array, *, out_dtype=None) -> jax.Array:
    """tokens: int [B, T]; embedding: float32 [charset_size, embed_dim].

    Returns [B, T, embed_dim] = sqrt(embed_dim) * embedding[tokens].
    """
    B, T = tokens.shape
    charset_size, embed_dim = embedding.shape
    N = B * T
    scale = math.sqrt(embed_dim)
    out_dtype = embedding.dtype if out_dtype is None else out_dtype

    # Pad table: rows to a 128-multiple charset (clean K), cols to lane-dense embed_dim.
    charset_p = _round_up(charset_size, 128)
    embed_dim_p = _round_up(embed_dim, 128)
    if (charset_p, embed_dim_p) != (charset_size, embed_dim):
        embedding = jnp.pad(
            embedding, ((0, charset_p - charset_size), (0, embed_dim_p - embed_dim))
        )

    tokens_flat = tokens.reshape(N).astype(jnp.int32)

    tile_n = _choose_tile_n(N, charset_p)
    if tile_n:
        n_pad = 0
    else:
        # N not a multiple of 8: pad with OOB ids (zero rows), sliced off below.
        tile_n = min(128, _round_up(N, 8))
        n_pad = -N % tile_n
        tokens_flat = jnp.pad(tokens_flat, (0, n_pad), constant_values=charset_p)
    N_p = N + n_pad
    tokens_col = tokens_flat.reshape(N_p, 1)

    kernel = functools.partial(
        _token_embedding_kernel, scale=scale, tile_n=tile_n, charset_p=charset_p
    )

    out = pl.pallas_call(
        kernel,
        out_shape=jax.ShapeDtypeStruct((N_p, embed_dim_p), out_dtype),
        grid_spec=pltpu.PrefetchScalarGridSpec(
            num_scalar_prefetch=0,
            grid=(N_p // tile_n,),
            in_specs=[
                # Whole token column, staged once and sliced per block in-kernel.
                pl.BlockSpec((N_p, 1), lambda i: (0, 0)),
                # Whole (tiny) embedding table, staged once and reused every step.
                pl.BlockSpec((charset_p, embed_dim_p), lambda i: (0, 0)),
            ],
            out_specs=pl.BlockSpec((tile_n, embed_dim_p), lambda i: (i, 0)),
        ),
        compiler_params=pltpu.CompilerParams(
            # Independent token blocks -> let v7x's two TensorCores split them.
            dimension_semantics=("parallel",),
        ),
    )(tokens_col, embedding)

    if n_pad or embed_dim_p != embed_dim:
        out = out[:N, :embed_dim]           # only taken when padding was unavoidable
    return out.reshape(B, T, embed_dim)


if __name__ == "__main__":
    # Small deterministic setup consistent with the module:
    #   charset_size=40, embed_dim=128, batch=2, seq_len=8
    charset_size = 40
    embed_dim = 128
    B, T = 2, 8

    key = jax.random.PRNGKey(0)
    k_emb, k_tok = jax.random.split(key)

    # nn.Embedding default init ~ N(0, 1)
    embedding = jax.random.normal(k_emb, (charset_size, embed_dim), dtype=jnp.float32)
    tokens = jax.random.randint(k_tok, (B, T), 0, charset_size, dtype=jnp.int32)

    out = token_embedding(tokens, embedding)
    out = jax.block_until_ready(out)

    # Reference check in plain JAX (same semantics as the PyTorch forward).
    ref = math.sqrt(embed_dim) * embedding[tokens]
    assert out.shape == (B, T, embed_dim)
    assert jnp.allclose(out, ref, atol=1e-5, rtol=1e-5)

    print("KERNEL_OK")
</pallas_src>

<mosaic_0001>
module attributes {stable_mosaic.version = 11 : i64} {
  func.func @_token_embedding_kernel(%arg0: i32, %arg1: memref<16x1xi32, #tpu.memory_space<vmem>>, %arg2: memref<128x128xf32, #tpu.memory_space<vmem>>, %arg3: memref<8x128xf32, #tpu.memory_space<vmem>>) attributes {dimension_semantics = [#tpu.dimension_semantics<parallel>], iteration_bounds = array<i64: 2>, scalar_prefetch = 0 : i64, scratch_operands = 0 : i64, tpu.core_type = #tpu.core_type<tc>, window_params = [{pipeline_mode = #tpu.pipeline_mode<synchronous>, transform_indices = @transform_0, window_bounds = array<i64: 16, 1>}, {pipeline_mode = #tpu.pipeline_mode<synchronous>, transform_indices = @transform_1, window_bounds = array<i64: 128, 128>}, {transform_indices = @transform_2, window_bounds = array<i64: 8, 128>}]} {
    %c8_i32 = arith.constant 8 : i32
    %0 = arith.muli %arg0, %c8_i32 : i32
    %1 = tpu.assume_multiple %0, 8 : i32
    %2 = arith.index_cast %1 : i32 to index
    %c0 = arith.constant 0 : index
    %3 = vector.load %arg1[%2, %c0] : memref<16x1xi32, #tpu.memory_space<vmem>>, vector<8x1xi32>
    %4 = tpu.iota {dimensions = array<i32: 1>} : vector<8x128xi32>
    %5 = vector.broadcast %3 : vector<8x1xi32> to vector<8x128xi32>
    %6 = arith.cmpi eq, %4, %5 : vector<8x128xi32>
    %7 = arith.extui %6 : vector<8x128xi1> to vector<8x128xi32>
    %8 = arith.sitofp %7 : vector<8x128xi32> to vector<8x128xf32>
    %c0_0 = arith.constant 0 : index
    %c0_1 = arith.constant 0 : index
    %9 = vector.load %arg2[%c0_0, %c0_1] : memref<128x128xf32, #tpu.memory_space<vmem>>, vector<128x128xf32>
    %cst = arith.constant dense<0.000000e+00> : vector<8x128xf32>
    %10 = tpu.matmul %8, %9, %cst {dimension_numbers = #tpu.dot_dimension_numbers<[1], [0], [0], [1], [0, 0, 1, 1], [], []>} : vector<8x128xf32>, vector<128x128xf32>, vector<8x128xf32> -> vector<8x128xf32>
    %cst_2 = arith.constant 11.3137083 : f32
    %11 = vector.broadcast %cst_2 : f32 to vector<8x128xf32>
    %12 = arith.mulf %10, %11 : vector<8x128xf32>
    %c0_3 = arith.constant 0 : index
    %c0_4 = arith.constant 0 : index
    %13 = vector.load %arg3[%c0_3, %c0_4] : memref<8x128xf32, #tpu.memory_space<vmem>>, vector<8x128xf32>
    tpu.vector_store %arg3[%c0_3, %c0_4], %12 {strides = array<i32>} : memref<8x128xf32, #tpu.memory_space<vmem>>, vector<8x128xf32>,
    return
  }
  func.func @transform_0(%arg0: i32) -> (i32, i32) {
    %c0_i32 = arith.constant 0 : i32
    %c0_i32_0 = arith.constant 0 : i32
    %c0_i32_1 = arith.constant 0 : i32
    return %c0_i32, %c0_i32_0 : i32, i32
  }
  func.func @transform_1(%arg0: i32) -> (i32, i32) {
    %c0_i32 = arith.constant 0 : i32
    %c0_i32_0 = arith.constant 0 : i32
    %c0_i32_1 = arith.constant 0 : i32
    return %c0_i32, %c0_i32_0 : i32, i32
  }
  func.func @transform_2(%arg0: i32) -> (i32, i32) {
    %c0_i32 = arith.constant 0 : i32
    %c0_i32_0 = arith.constant 0 : i32
    return %arg0, %c0_i32 : i32, i32
  }
}

</mosaic_0001>

<llo_original>
// kernel: tpu_custom_call.1
$region0: #{tpu_custom_call.1}
  #allocation0 [shape = 'u32[]', space=smem, size = 0x4, offset = 0x4, fixed_abs, tag = 'smem constant byte address 0x4 - core index']
  #allocation1 [shape = 'u32[144,128]{1,0:T(1,128)}', space=vmem, size = 0x12000, scoped, tag = 'internal scratch']
  %s0 = inlined_call_operand.vmem [shape: s32[16,1], index: 0, kind: input, shape index: {}]
  %s1 = inlined_call_operand.hbm [shape: f32[128,128], index: 1, kind: input, shape index: {}]
  %s2 = inlined_call_operand.hbm [shape: f32[16,128], index: 2, kind: output, shape index: {}]
  %s3 = sld [smem:[#allocation0]]
  $region45: #{tpu_custom_call.1} parent=0
    _
  %s5 = ssub.s32 1, %s3
  %s6 = scalar_select 0, %s5, %s3
  $region1: #{tpu_custom_call.1} parent=0
    #allocation2 [shape = 'u8[65536]{0}', space=vmem, size = 0x10000, scoped, tag = 'input window, operand 1, single buffered']
    #allocation3 [shape = 's32[2]{0}', space=sflag, size = 0x8, scoped, tag = 'scoped memory for tpu_custom_call.1']
    #allocation4 [shape = 's32[2]{0}', space=sflag, size = 0x8, scoped, tag = 'scoped memory for tpu_custom_call.1']
    #allocation5 [shape = 'u8[8192]{0}', space=vmem, size = 0x2000, scoped, tag = 'output window, operand 0']
    %7 = vsyncpa [#allocation3], 0
    %8 = vsyncpa [#allocation4], 0
    %s9 = scalar_lea.sflag [#allocation4], 1
    %10 = vsyncpa %s9, 0
    loop: start=0, step=1, limit=4
    $region2: #{tpu_custom_call.1} parent=1 // loop_pre_header
      _
    $region3: #{tpu_custom_call.1} parent=1 // loop_header
      %s12 = sphi 0, %s16
      %p13 = scmp.ge.s32.totalorder %s12, 4
      %s20 = sphi 0, %s20
      %s22 = sphi 0, %s20
      %s23 = sphi 0, %s22
      %s37 = sphi 0, %s23
      %s41 = sphi 0, %s41
      %s43 = sphi 0, %s41
      %s44 = sphi 0, %s43
      %s58 = sphi 0, %s44
      %s64 = sphi 0, %s66
      %s67 = sphi 0, %s64
      %s68 = sphi 0, %s67
      %s84 = sphi 0, %s68
    $region4: #{tpu_custom_call.1} parent=1 // loop_header_branch
      %15 = sbr.rel (%p13) target = $region8
    $region5: #{tpu_custom_call.1} parent=1 // loop_body
      %s17 = ssub.s32 %s12, 1
      %s18 = ssub.s32 %s12, 2
      %s19 = sadd.s32 %s12, 1
      %s21 = sadd.s32 %s20, 1
      %p24 = scmp.eq.s32.totalorder %s12, 1
      %p25 = scmp.ne.s32.totalorder %s20, %s22
      %p26 = scmp.eq.s32.totalorder %s12, 0
      %p27 = por %p25, %p26
      %p28 = scmp.ne.s32.totalorder %s20, %s22
      %p29 = scmp.eq.s32.totalorder %s17, 1
      %p30 = por %p28, %p29
      %p31 = scmp.ne.s32.totalorder %s22, %s23
      %p32 = scmp.eq.s32.totalorder %s17, 0
      %p33 = por %p31, %p32
      %p34 = scmp.ne.s32.totalorder %s22, %s23
      %p35 = scmp.eq.s32.totalorder %s18, 1
      %p36 = por %p34, %p35
      %p38 = scmp.ne.s32.totalorder %s23, %s37
      %p39 = scmp.eq.s32.totalorder %s18, 0
      %p40 = por %p38, %p39
      %s42 = sadd.s32 %s41, 1
      %p45 = scmp.eq.s32.totalorder %s12, 1
      %p46 = scmp.ne.s32.totalorder %s41, %s43
      %p47 = scmp.eq.s32.totalorder %s12, 0
      %p48 = por %p46, %p47
      %p49 = scmp.ne.s32.totalorder %s41, %s43
      %p50 = scmp.eq.s32.totalorder %s17, 1
      %p51 = por %p49, %p50
      %p52 = scmp.ne.s32.totalorder %s43, %s44
      %p53 = scmp.eq.s32.totalorder %s17, 0
      %p54 = por %p52, %p53
      %p55 = scmp.ne.s32.totalorder %s43, %s44
      %p56 = scmp.eq.s32.totalorder %s18, 1
      %p57 = por %p55, %p56
      %p59 = scmp.ne.s32.totalorder %s44, %s58
      %p60 = scmp.eq.s32.totalorder %s18, 0
      %p61 = por %p59, %p60
      %s62 = ssub.s32 %s12, %s19
      %p63 = scmp.eq.s32.totalorder %s62, 0
      %s65 = sadd.s32 %s64, 1
      %s66 = scalar_select %p63, %s64, %s65
      %p69 = pneg %p63
      %p70 = scmp.eq.s32.totalorder %s12, 1
      %p71 = por %p69, %p70
      %p72 = scmp.ne.s32.totalorder %s64, %s67
      %p73 = scmp.eq.s32.totalorder %s12, 0
      %p74 = por %p72, %p73
      %p75 = scmp.ne.s32.totalorder %s64, %s67
      %p76 = scmp.eq.s32.totalorder %s17, 1
      %p77 = por %p75, %p76
      %p78 = scmp.ne.s32.totalorder %s67, %s68
      %p79 = scmp.eq.s32.totalorder %s17, 0
      %p80 = por %p78, %p79
      %p81 = scmp.ne.s32.totalorder %s67, %s68
      %p82 = scmp.eq.s32.totalorder %s18, 1
      %p83 = por %p81, %p82
      %p85 = scmp.ne.s32.totalorder %s68, %s84
      %p86 = scmp.eq.s32.totalorder %s18, 0
      %p87 = por %p85, %p86
      %p88 = scmp.le.s32.totalorder 1, %s12
      %p89 = scmp.lt.s32.totalorder %s12, 3
      %p90 = pnand %p88, %p89
      %p91 = pneg %p90
      // Predicated region
      $region9: #{tpu_custom_call.1} parent=5 // pred_check
        _
      $region10: #{tpu_custom_call.1} parent=5 // pred_check_branch
        %93 = sbr.rel (%p90) target = $region12
      $region11: #{tpu_custom_call.1} parent=5 // pred_region
        %s94 = ssub.s32 %s12, 1
        // Predicated region
        $region13: #{tpu_custom_call.1} parent=11 // pred_check
          %p95 = pneg %p33
        $region14: #{tpu_custom_call.1} parent=11 // pred_check_branch
          %97 = sbr.rel (%p95) target = $region16
        $region15: #{tpu_custom_call.1} parent=11 // pred_region
          _
        $region16: #{tpu_custom_call.1} parent=11 // pred_fallthru
          _
        // Predicated region
        $region17: #{tpu_custom_call.1} parent=11 // pred_check
          %p98 = pneg %p54
        $region18: #{tpu_custom_call.1} parent=11 // pred_check_branch
          %100 = sbr.rel (%p98) target = $region20
        $region19: #{tpu_custom_call.1} parent=11 // pred_region
          %s102 = ssub.s32 2048, 2048
          %103 = vsyncadd [#allocation3], %s102
          %s104 = sshll.u32 [#allocation2], 4
          %s105 = int_to_ptr.vmem [resolvable:$true] %s104
          %110 = dma.hbm_to_vmem [thread:$0]  %s1, 2048, %s105, [#allocation3], 128, 128, 8
        $region20: #{tpu_custom_call.1} parent=11 // pred_fallthru
          _
      $region12: #{tpu_custom_call.1} parent=5 // pred_fallthru
        _
      %p111 = scmp.lt.s32.totalorder %s12, 2
      // Predicated region
      $region21: #{tpu_custom_call.1} parent=5 // pred_check
        %p112 = pneg %p111
      $region22: #{tpu_custom_call.1} parent=5 // pred_check_branch
        %114 = sbr.rel (%p112) target = $region24
      $region23: #{tpu_custom_call.1} parent=5 // pred_region
        _
      $region24: #{tpu_custom_call.1} parent=5 // pred_fallthru
        _
      %p115 = scmp.le.s32.totalorder 1, %s12
      %p116 = scmp.lt.s32.totalorder %s12, 3
      %p117 = pnand %p115, %p116
      %p118 = pneg %p117
      // Predicated region
      $region25: #{tpu_custom_call.1} parent=5 // pred_check
        _
      $region26: #{tpu_custom_call.1} parent=5 // pred_check_branch
        %120 = sbr.rel (%p117) target = $region28
      $region27: #{tpu_custom_call.1} parent=5 // pred_region
        %s121 = ssub.s32 %s12, 1
        // Predicated region
        $region29: #{tpu_custom_call.1} parent=27 // pred_check
          %p122 = pneg %p54
        $region30: #{tpu_custom_call.1} parent=27 // pred_check_branch
          %124 = sbr.rel (%p122) target = $region32
        $region31: #{tpu_custom_call.1} parent=27 // pred_region
          %125 = dma.done [#allocation3], 2048
        $region32: #{tpu_custom_call.1} parent=27 // pred_fallthru
          _
        %p126 = pneg %p33
        %p127 = pneg %p30
        %p128 = pneg %p54
        %p129 = pneg %p51
        %p130 = pneg %p80
        %p131 = pneg %p77
        %s132 = sand.u32 %s67, 1
        %s133 = scalar_lea.sflag [#allocation4], %s132
        %s134 = sand.u32 %s67, 1
        %s135 = smul.addr %s134, 8
        %s136 = scalar_lea.vmem [#allocation5], %s135
        %s137 = smul.u32 %s17, 8
        %s138 = scalar_lea.vmem %s0, %s137
        %v139 = vld [vmem:[%s138] sm:$0xff]
        %v140 = vlaneseq
        %v141 = vand.u32 %v140, 127
        %142 = vset.pattern.permute.xlu0 0
        %143 = vperm.xlu0 %142, %v139
        %v144 = vpop.permute.xlu0 %143
        %vm145 = vcmp.eq.s32.totalorder %v141, %v144
        %v146 = vsel %vm145, 1, 0
        %v147 = vcvt.s32.f32 %v146
        %v148 = vld [vmem:[#allocation2] sm:$0xff]
        %v149 = vld [vmem:[#allocation2 + $0x8] sm:$0xff]
        %v150 = vld [vmem:[#allocation2 + $0x10] sm:$0xff]
        %v151 = vld [vmem:[#allocation2 + $0x18] sm:$0xff]
        %v152 = vld [vmem:[#allocation2 + $0x20] sm:$0xff]
        %v153 = vld [vmem:[#allocation2 + $0x28] sm:$0xff]
        %v154 = vld [vmem:[#allocation2 + $0x30] sm:$0xff]
        %v155 = vld [vmem:[#allocation2 + $0x38] sm:$0xff]
        %v156 = vld [vmem:[#allocation2 + $0x40] sm:$0xff]
        %v157 = vld [vmem:[#allocation2 + $0x48] sm:$0xff]
        %v158 = vld [vmem:[#allocation2 + $0x50] sm:$0xff]
        %v159 = vld [vmem:[#allocation2 + $0x58] sm:$0xff]
        %v160 = vld [vmem:[#allocation2 + $0x60] sm:$0xff]
        %v161 = vld [vmem:[#allocation2 + $0x68] sm:$0xff]
        %v162 = vld [vmem:[#allocation2 + $0x70] sm:$0xff]
        %v163 = vld [vmem:[#allocation2 + $0x78] sm:$0xff]
        %164 = vmatprep.subr.mxu0 0.0
        %165 = vmatpush1.msra.mxu0 %v148
        %166 = vmatprep.subr.mxu0 0.0
        %167 = vmatpush1.msra.mxu0 %v149
        %168 = vmatprep.subr.mxu0 0.0
        %169 = vmatpush1.msra.mxu0 %v150
        %170 = vmatprep.subr.mxu0 0.0
        %171 = vmatpush1.msra.mxu0 %v151
        %172 = vmatprep.subr.mxu0 0.0
        %173 = vmatpush1.msra.mxu0 %v152
        %174 = vmatprep.subr.mxu0 0.0
        %175 = vmatpush1.msra.mxu0 %v153
        %176 = vmatprep.subr.mxu0 0.0
        %177 = vmatpush1.msra.mxu0 %v154
        %178 = vmatprep.subr.mxu0 0.0
        %179 = vmatpush1.msra.mxu0 %v155
        %180 = vmatprep.subr.mxu0 0.0
        %181 = vmatpush1.msra.mxu0 %v156
        %182 = vmatprep.subr.mxu0 0.0
        %183 = vmatpush1.msra.mxu0 %v157
        %184 = vmatprep.subr.mxu0 0.0
        %185 = vmatpush1.msra.mxu0 %v158
        %186 = vmatprep.subr.mxu0 0.0
        %187 = vmatpush1.msra.mxu0 %v159
        %188 = vmatprep.subr.mxu0 0.0
        %189 = vmatpush1.msra.mxu0 %v160
        %190 = vmatprep.subr.mxu0 0.0
        %191 = vmatpush1.msra.mxu0 %v161
        %192 = vmatprep.subr.mxu0 0.0
        %193 = vmatpush1.msra.mxu0 %v162
        %194 = vmatprep.subr.mxu0 0.0
        %195 = vmatpush1.msra.mxu0 %v163
        %196 = vmatprep.subr.mxu0 0.0
        %197 = vmatpush1.msra.mxu0 0.0
        %198 = vmatprep.subr.mxu0 0.0
        %199 = vmatpush1.msra.mxu0 0.0
        %200 = vmatprep.subr.mxu0 0.0
        %201 = vmatpush1.msra.mxu0 0.0
        %202 = vmatprep.subr.mxu0 0.0
        %203 = vmatpush1.msra.mxu0 0.0
        %204 = vmatprep.subr.mxu0 0.0
        %205 = vmatpush1.msra.mxu0 0.0
        %206 = vmatprep.subr.mxu0 0.0
        %207 = vmatpush1.msra.mxu0 0.0
        %208 = vmatprep.subr.mxu0 0.0
        %209 = vmatpush1.msra.mxu0 0.0
        %210 = vmatprep.subr.mxu0 0.0
        %211 = vmatpush1.msra.mxu0 0.0
        %212 = vmatprep.subr.mxu0 0.0
        %213 = vmatpush1.msra.mxu0 0.0
        %214 = vmatprep.subr.mxu0 0.0
        %215 = vmatpush1.msra.mxu0 0.0
        %216 = vmatprep.subr.mxu0 0.0
        %217 = vmatpush1.msra.mxu0 0.0
        %218 = vmatprep.subr.mxu0 0.0
        %219 = vmatpush1.msra.mxu0 0.0
        %220 = vmatprep.subr.mxu0 0.0
        %221 = vmatpush1.msra.mxu0 0.0
        %222 = vmatprep.subr.mxu0 0.0
        %223 = vmatpush1.msra.mxu0 0.0
        %224 = vmatprep.subr.mxu0 0.0
        %225 = vmatpush1.msra.mxu0 0.0
        %226 = vmatprep.subr.mxu0 0.0
        %227 = vmatpush1.msra.mxu0 0.0
        %228 = vmatprep.mubr.f32.mxu0 0.0
        %229 = vmatmul.mubr.f32.gmra.mrb[0].mxu0 %v147
        %v230 = vpop.f32.mrb[0].mxu0
        %v231 = vadd.f32 0.0, %v230
        %v232 = vpop.f32.mrb[0].mxu0
        %233 = vdwg.mxu0
        %v234 = vmul.f32 %v231, 11.313708
        %235 = vst [vmem:[%s136] sm:$0xff] %v234
        %s236 = sand.u32 %s67, 1
        %s237 = scalar_lea.sflag [#allocation4], %s236
        %s238 = sand.u32 %s67, 1
        %s239 = smul.addr %s238, 8
        %s240 = scalar_lea.vmem [#allocation5], %s239
        // Predicated region
        $region33: #{tpu_custom_call.1} parent=27 // pred_check
          %p241 = pneg %p77
        $region34: #{tpu_custom_call.1} parent=27 // pred_check_branch
          %243 = sbr.rel (%p241) target = $region36
        $region35: #{tpu_custom_call.1} parent=27 // pred_region
          %s245 = ssub.s32 128, 128
          %246 = vsyncadd %s237, %s245
          %s247 = smul.addr %s17, 128
          %s248 = scalar_lea.hbm %s2, %s247
          %s250 = sshll.u32 %s240, 4
          %s251 = int_to_ptr.vmem [resolvable:$true] %s250
          %253 = dma.vmem_to_hbm [thread:$0]  %s251, 128, %s248, %s237
        $region36: #{tpu_custom_call.1} parent=27 // pred_fallthru
          _
      $region28: #{tpu_custom_call.1} parent=5 // pred_fallthru
        _
      %p254 = scmp.le.s32.totalorder 2, %s12
      // Predicated region
      $region37: #{tpu_custom_call.1} parent=5 // pred_check
        %p255 = pneg %p254
      $region38: #{tpu_custom_call.1} parent=5 // pred_check_branch
        %257 = sbr.rel (%p255) target = $region40
      $region39: #{tpu_custom_call.1} parent=5 // pred_region
        %s258 = ssub.s32 %s12, 2
        // Predicated region
        $region41: #{tpu_custom_call.1} parent=39 // pred_check
          %p259 = pneg %p83
        $region42: #{tpu_custom_call.1} parent=39 // pred_check_branch
          %261 = sbr.rel (%p259) target = $region44
        $region43: #{tpu_custom_call.1} parent=39 // pred_region
          %s262 = sand.u32 %s68, 1
          %s263 = scalar_lea.sflag [#allocation4], %s262
          %s264 = sand.u32 %s68, 1
          %s265 = smul.addr %s264, 8
          %s266 = scalar_lea.vmem [#allocation5], %s265
          %267 = dma.done %s263, 128
        $region44: #{tpu_custom_call.1} parent=39 // pred_fallthru
          _
      $region40: #{tpu_custom_call.1} parent=5 // pred_fallthru
        _
    $region6: #{tpu_custom_call.1} parent=1 // loop_footer
      %s16 = sadd.s32 1, %s12
    $region7: #{tpu_custom_call.1} parent=1 // loop_footer_branch
      %11 = sbr.rel target = $region3
    $region8: #{tpu_custom_call.1} parent=1 // loop_exit
      _
    %268 = vsyncpa [#allocation3], 1
    %s269 = scalar_lea.sflag [#allocation3], 1
    %270 = vsyncpa %s269, 1
    %271 = vsyncpa [#allocation4], 1
    %s272 = scalar_lea.sflag [#allocation4], 1
    %273 = vsyncpa %s272, 1

</llo_original>
